<compile_context>
chip_gen: v5e
topology: v5e:2x2
jax: 0.10.0
libtpu: 0.0.40
codegen_flags: <defaults>
</compile_context>

<pallas_src>
import functools
import math

import jax
import jax.numpy as jnp
from jax.experimental import pallas as pl
from jax.experimental.pallas import tpu as pltpu


def _round_up(n, m):
    return ((n + m - 1) // m) * m


# -----------------------------------------------------------------------------
# Fused kernel: DoReFa weight quantization (once, step 0) + tiled matmul + bias.
#   w_ref    : (O_pad, K_pad) f32   -- raw weight, resident (constant index_map)
#   b_ref    : (1, O_pad)     f32   -- bias, resident
#   x_ref    : (tm, K_pad)    bf16  -- streamed activation tile
#   o_ref    : (tm, O_pad)    f32   -- streamed output tile
#   wq_t_ref : (K_pad, O_pad) bf16  -- VMEM scratch: quantized, transposed weight
# -----------------------------------------------------------------------------
def _dorefa_linear_kernel(w_ref, b_ref, x_ref, o_ref, wq_t_ref, *, n_levels):
    @pl.when(pl.program_id(0) == 0)
    def _():
        w = jnp.tanh(w_ref[...].astype(jnp.float32))          # (O_pad, K_pad)
        max_abs = jnp.maximum(jnp.max(jnp.abs(w)), 1e-8)      # eps-guard
        # canonical DoReFa: x = w/(2*max|w|)+0.5 in [0,1]; q_k(x)=round(x*n)/n; 2q-1
        q = jnp.round((w / (2.0 * max_abs) + 0.5) * n_levels) / n_levels
        wq_t_ref[...] = (2.0 * q - 1.0).T.astype(jnp.bfloat16)  # (K_pad, O_pad)

    acc = jnp.dot(x_ref[...], wq_t_ref[...],
                  preferred_element_type=jnp.float32)          # MXU, f32 acc
    o_ref[...] = (acc + b_ref[...]).astype(o_ref.dtype)


def dorefa_linear_forward(x, weight, bias, *, weight_bits=8, tm_max=512):
    """x: (..., K) f32, weight: (O, K) f32, bias: (O,) f32 -> (..., O) f32."""
    O, K = weight.shape
    batch_shape = x.shape[:-1]
    M = max(1, math.prod(batch_shape))

    # Lane-dense padding: last dims to multiples of 128, rows to the M tile.
    K_pad = _round_up(K, 128)
    O_pad = _round_up(O, 128)
    tm = min(tm_max, _round_up(M, 128))
    M_pad = _round_up(M, tm)

    # Zero padding is inert: padded x columns are exactly 0, padded output
    # rows/columns are sliced away, and zeros never change max|tanh(w)|.
    x_p = jnp.zeros((M_pad, K_pad), jnp.bfloat16).at[:M, :K].set(
        x.reshape(M, K).astype(jnp.bfloat16))
    w_p = jnp.zeros((O_pad, K_pad), jnp.float32).at[:O, :K].set(
        weight.astype(jnp.float32))
    b_p = jnp.zeros((1, O_pad), jnp.float32).at[0, :O].set(
        bias.astype(jnp.float32))

    # Explicit VMEM budget (double-buffered streams + resident weight + scratch).
    vmem_bytes = (
        2 * tm * K_pad * 2        # x tiles (bf16, double-buffered)
        + 2 * O_pad * K_pad * 4   # weight block (f32)
        + 2 * 8 * O_pad * 4       # bias block (sublane-padded)
        + 2 * tm * O_pad * 4      # output tiles (f32, double-buffered)
        + K_pad * O_pad * 2       # quantized-weight scratch (bf16)
    )
    vmem_limit = min(int(vmem_bytes * 1.5) + (8 << 20), 64 * 1024 * 1024)

    n_levels = float(2 ** weight_bits - 1)
    out = pl.pallas_call(
        functools.partial(_dorefa_linear_kernel, n_levels=n_levels),
        out_shape=jax.ShapeDtypeStruct((M_pad, O_pad), jnp.float32),
        grid_spec=pltpu.PrefetchScalarGridSpec(
            num_scalar_prefetch=0,
            grid=(M_pad // tm,),
            in_specs=[
                pl.BlockSpec((O_pad, K_pad), lambda i: (0, 0)),  # weight (resident)
                pl.BlockSpec((1, O_pad), lambda i: (0, 0)),      # bias (resident)
                pl.BlockSpec((tm, K_pad), lambda i: (i, 0)),     # x tiles (streamed)
            ],
            out_specs=pl.BlockSpec((tm, O_pad), lambda i: (i, 0)),
            scratch_shapes=[pltpu.VMEM((K_pad, O_pad), jnp.bfloat16)],
        ),
        compiler_params=pltpu.CompilerParams(
            # "arbitrary": the quantized-weight scratch is written on step 0 and
            # reused by later steps, so the M axis must execute sequentially.
            dimension_semantics=("arbitrary",),
            vmem_limit_bytes=vmem_limit,
        ),
    )(w_p, b_p, x_p)

    return out[:M, :O].reshape(*batch_shape, O)


if __name__ == "__main__":
    key = jax.random.PRNGKey(0)
    k_x, k_w, k_b = jax.random.split(key, 3)

    # Small shapes consistent with the module: Linear(32 -> 64), x = (2, 8, 32)
    batch, seq, in_features, out_features = 2, 8, 32, 64
    weight_bits = 8  # "weight_dtype" interpreted as DoReFa bit-width

    x = jax.random.normal(k_x, (batch, seq, in_features), dtype=jnp.float32)
    # deterministic parameter init (kaiming-uniform-like bound, as in nn.Linear)
    bound = 1.0 / float(jnp.sqrt(in_features))
    weight = jax.random.uniform(k_w, (out_features, in_features),
                                minval=-bound, maxval=bound, dtype=jnp.float32)
    bias = jax.random.uniform(k_b, (out_features,), minval=-bound, maxval=bound,
                              dtype=jnp.float32)

    y = dorefa_linear_forward(x, weight, bias, weight_bits=weight_bits)
    y = jax.block_until_ready(y)
    assert y.shape == (batch, seq, out_features), y.shape

    # Pure-JAX reference of the same math.
    n = 2 ** weight_bits - 1
    tw = jnp.tanh(weight)
    qw = 2.0 * jnp.round(
        (tw / (2.0 * jnp.maximum(jnp.max(jnp.abs(tw)), 1e-8)) + 0.5) * n) / n - 1.0

    # (a) tight check against what the kernel computes (bf16 operands, f32 acc).
    y_bf16_ref = jnp.dot(x.astype(jnp.bfloat16).astype(jnp.float32),
                         qw.astype(jnp.bfloat16).astype(jnp.float32).T) + bias
    assert float(jnp.max(jnp.abs(y - y_bf16_ref))) < 2e-3

    # (b) loose check against the full-f32 module semantics.
    y_f32_ref = x @ qw.T + bias
    assert float(jnp.max(jnp.abs(y - y_f32_ref))) < 1e-1

    print("KERNEL_OK")
</pallas_src>

<mosaic_0001>
module attributes {stable_mosaic.version = 11 : i64} {
  func.func @_dorefa_linear_kernel(%arg0: i32, %arg1: memref<128x128xf32, #tpu.memory_space<vmem>>, %arg2: memref<1x128xf32, #tpu.memory_space<vmem>>, %arg3: memref<128x128xbf16, #tpu.memory_space<vmem>>, %arg4: memref<128x128xf32, #tpu.memory_space<vmem>>, %arg5: memref<128x128xbf16, #tpu.memory_space<vmem>>) attributes {dimension_semantics = [#tpu.dimension_semantics<arbitrary>], iteration_bounds = array<i64: 1>, scalar_prefetch = 0 : i64, scratch_operands = 1 : i64, tpu.core_type = #tpu.core_type<tc>, window_params = [{pipeline_mode = #tpu.pipeline_mode<synchronous>, transform_indices = @transform_0, window_bounds = array<i64: 128, 128>}, {pipeline_mode = #tpu.pipeline_mode<synchronous>, transform_indices = @transform_1, window_bounds = array<i64: 1, 128>}, {transform_indices = @transform_2, window_bounds = array<i64: 128, 128>}, {transform_indices = @transform_3, window_bounds = array<i64: 128, 128>}]} {
    %c0_i32 = arith.constant 0 : i32
    %0 = arith.cmpi eq, %arg0, %c0_i32 : i32
    %1 = arith.extui %0 : i1 to i32
    %c0_i32_0 = arith.constant 0 : i32
    %2 = arith.cmpi ne, %1, %c0_i32_0 : i32
    scf.if %2 {
      %c0_8 = arith.constant 0 : index
      %c0_9 = arith.constant 0 : index
      %10 = vector.load %arg1[%c0_8, %c0_9] : memref<128x128xf32, #tpu.memory_space<vmem>>, vector<128x128xf32>
      %11 = math.tanh %10 : vector<128x128xf32>
      %12 = math.absf %11 : vector<128x128xf32>
      %13 = vector.shape_cast %12 : vector<128x128xf32> to vector<1x128x128xf32>
      %cst_10 = arith.constant dense<0xFF800000> : vector<1xf32>
      %14 = vector.multi_reduction <maximumf>, %13, %cst_10 [1, 2] : vector<1x128x128xf32> to vector<1xf32>
      %15 = vector.shape_cast %14 : vector<1xf32> to vector<1x1x1xf32>
      %16 = vector.extract %15[0, 0, 0] : f32 from vector<1x1x1xf32>
      %cst_11 = arith.constant 9.99999993E-9 : f32
      %17 = arith.maximumf %16, %cst_11 : f32
      %cst_12 = arith.constant 2.000000e+00 : f32
      %18 = arith.mulf %cst_12, %17 : f32
      %19 = vector.broadcast %18 : f32 to vector<128x128xf32>
      %20 = arith.divf %11, %19 : vector<128x128xf32>
      %cst_13 = arith.constant 5.000000e-01 : f32
      %21 = vector.broadcast %cst_13 : f32 to vector<128x128xf32>
      %22 = arith.addf %20, %21 : vector<128x128xf32>
      %cst_14 = arith.constant 2.550000e+02 : f32
      %23 = vector.broadcast %cst_14 : f32 to vector<128x128xf32>
      %24 = arith.mulf %22, %23 : vector<128x128xf32>
      %25 = math.roundeven %24 : vector<128x128xf32>
      %cst_15 = arith.constant 2.550000e+02 : f32
      %26 = vector.broadcast %cst_15 : f32 to vector<128x128xf32>
      %27 = arith.divf %25, %26 : vector<128x128xf32>
      %cst_16 = arith.constant 2.000000e+00 : f32
      %28 = vector.broadcast %cst_16 : f32 to vector<128x128xf32>
      %29 = arith.mulf %28, %27 : vector<128x128xf32>
      %cst_17 = arith.constant 1.000000e+00 : f32
      %30 = vector.broadcast %cst_17 : f32 to vector<128x128xf32>
      %31 = arith.subf %29, %30 : vector<128x128xf32>
      %32 = tpu.transpose %31, [1, 0] : vector<128x128xf32> -> vector<128x128xf32>
      %33 = arith.truncf %32 : vector<128x128xf32> to vector<128x128xbf16>
      %c0_18 = arith.constant 0 : index
      %c0_19 = arith.constant 0 : index
      %34 = vector.load %arg5[%c0_18, %c0_19] : memref<128x128xbf16, #tpu.memory_space<vmem>>, vector<128x128xbf16>
      tpu.vector_store %arg5[%c0_18, %c0_19], %33 {strides = array<i32>} : memref<128x128xbf16, #tpu.memory_space<vmem>>, vector<128x128xbf16>,
    } else {
    }
    %c0 = arith.constant 0 : index
    %c0_1 = arith.constant 0 : index
    %3 = vector.load %arg3[%c0, %c0_1] : memref<128x128xbf16, #tpu.memory_space<vmem>>, vector<128x128xbf16>
    %c0_2 = arith.constant 0 : index
    %c0_3 = arith.constant 0 : index
    %4 = vector.load %arg5[%c0_2, %c0_3] : memref<128x128xbf16, #tpu.memory_space<vmem>>, vector<128x128xbf16>
    %cst = arith.constant dense<0.000000e+00> : vector<128x128xf32>
    %5 = tpu.matmul %3, %4, %cst {dimension_numbers = #tpu.dot_dimension_numbers<[1], [0], [0], [1], [0, 0, 1, 1], [], []>} : vector<128x128xbf16>, vector<128x128xbf16>, vector<128x128xf32> -> vector<128x128xf32>
    %c0_4 = arith.constant 0 : index
    %c0_5 = arith.constant 0 : index
    %6 = vector.load %arg2[%c0_4, %c0_5] : memref<1x128xf32, #tpu.memory_space<vmem>>, vector<1x128xf32>
    %7 = vector.broadcast %6 : vector<1x128xf32> to vector<128x128xf32>
    %8 = arith.addf %5, %7 : vector<128x128xf32>
    %c0_6 = arith.constant 0 : index
    %c0_7 = arith.constant 0 : index
    %9 = vector.load %arg4[%c0_6, %c0_7] : memref<128x128xf32, #tpu.memory_space<vmem>>, vector<128x128xf32>
    tpu.vector_store %arg4[%c0_6, %c0_7], %8 {strides = array<i32>} : memref<128x128xf32, #tpu.memory_space<vmem>>, vector<128x128xf32>,
    return
  }
  func.func @transform_0(%arg0: i32) -> (i32, i32) {
    %c0_i32 = arith.constant 0 : i32
    %c0_i32_0 = arith.constant 0 : i32
    %c0_i32_1 = arith.constant 0 : i32
    return %c0_i32, %c0_i32_0 : i32, i32
  }
  func.func @transform_1(%arg0: i32) -> (i32, i32) {
    %c0_i32 = arith.constant 0 : i32
    %c0_i32_0 = arith.constant 0 : i32
    %c0_i32_1 = arith.constant 0 : i32
    return %c0_i32, %c0_i32_0 : i32, i32
  }
  func.func @transform_2(%arg0: i32) -> (i32, i32) {
    %c0_i32 = arith.constant 0 : i32
    %c0_i32_0 = arith.constant 0 : i32
    return %arg0, %c0_i32 : i32, i32
  }
  func.func @transform_3(%arg0: i32) -> (i32, i32) {
    %c0_i32 = arith.constant 0 : i32
    %c0_i32_0 = arith.constant 0 : i32
    return %arg0, %c0_i32 : i32, i32
  }
}

</mosaic_0001>

<llo_original>
// kernel: tpu_custom_call.1
$region0: #{tpu_custom_call.1}
  #allocation0 [shape = 'u32[]', space=smem, size = 0x4, offset = 0x4, fixed_abs, tag = 'smem constant byte address 0x4 - core index']
  #allocation1 [shape = 'u32[72,128]{1,0:T(1,128)}', space=vmem, size = 0x9000, scoped, tag = 'internal scratch']
  #allocation2 [shape = 'bf16[128,128]{1,0:T(8,128)(2,1)}', space=vmem, size = 0x8000, scoped, tag = 'scratch operand']
  %s0 = inlined_call_operand.hbm [shape: f32[128,128], index: 0, kind: input, shape index: {}]
  %s1 = inlined_call_operand.hbm [shape: f32[1,128], index: 1, kind: input, shape index: {}]
  %s2 = inlined_call_operand.hbm [shape: bf16[128,128], index: 2, kind: input, shape index: {}]
  %s3 = inlined_call_operand.hbm [shape: f32[128,128], index: 3, kind: output, shape index: {}]
  %s4 = sld [smem:[#allocation0]]
  $region38: #{tpu_custom_call.1} parent=0
    _
  %s6 = ssub.s32 1, %s4
  %s7 = scalar_select 0, %s6, %s4
  $region1: #{tpu_custom_call.1} parent=0
    #allocation3 [shape = 'u8[65536]{0}', space=vmem, size = 0x10000, scoped, tag = 'input window, operand 0, single buffered']
    #allocation4 [shape = 's32[1]{0}', space=sflag, size = 0x4, scoped, tag = 'scoped memory for tpu_custom_call.1']
    #allocation5 [shape = 's32[1]{0}', space=sflag, size = 0x4, scoped, tag = 'scoped memory for tpu_custom_call.1']
    #allocation6 [shape = 'u8[512]{0}', space=vmem, size = 0x400, scoped, tag = 'input window, operand 1, single buffered']
    #allocation7 [shape = 's32[1]{0}', space=sflag, size = 0x4, scoped, tag = 'scoped memory for tpu_custom_call.1']
    #allocation8 [shape = 'u8[32768]{0}', space=vmem, size = 0x8000, scoped, tag = 'input window, operand 2, single buffered']
    #allocation9 [shape = 'u8[65536]{0}', space=vmem, size = 0x10000, scoped, tag = 'output window, operand 0, single buffered']
    %8 = vsyncpa [#allocation4], 0
    %9 = vsyncpa [#allocation7], 0
    %10 = vsyncpa [#allocation5], 0
    // Predicated region
    $region2: #{tpu_custom_call.1} parent=1 // pred_check
      _
    $region3: #{tpu_custom_call.1} parent=1 // pred_check_branch
      %12 = sbr.rel (0) target = $region5
    $region4: #{tpu_custom_call.1} parent=1 // pred_region
      %14 = vsyncadd [#allocation4], 0
      %s15 = sshll.u32 %s0, 4
      %s16 = int_to_ptr.hbm [resolvable:$true] %s15
      %s17 = sshll.u32 [#allocation3], 4
      %s18 = int_to_ptr.vmem [resolvable:$true] %s17
      %23 = dma.hbm_to_vmem [thread:$0]  %s16, 2048, %s18, [#allocation4], 128, 128, 8
    $region5: #{tpu_custom_call.1} parent=1 // pred_fallthru
      _
    // Predicated region
    $region6: #{tpu_custom_call.1} parent=1 // pred_check
      _
    $region7: #{tpu_custom_call.1} parent=1 // pred_check_branch
      %25 = sbr.rel (0) target = $region9
    $region8: #{tpu_custom_call.1} parent=1 // pred_region
      %27 = vsyncadd [#allocation7], 0
      %s29 = sshll.u32 %s1, 4
      %s30 = int_to_ptr.hbm [resolvable:$true] %s29
      %s31 = sshll.u32 [#allocation6], 4
      %s32 = int_to_ptr.vmem [resolvable:$true] %s31
      %34 = dma.hbm_to_vmem [thread:$0]  %s30, 16, %s32, [#allocation7]
    $region9: #{tpu_custom_call.1} parent=1 // pred_fallthru
      _
    // Predicated region
    $region10: #{tpu_custom_call.1} parent=1 // pred_check
      _
    $region11: #{tpu_custom_call.1} parent=1 // pred_check_branch
      %36 = sbr.rel (0) target = $region13
    $region12: #{tpu_custom_call.1} parent=1 // pred_region
      %38 = vsyncadd [#allocation7], 0
      %s39 = sshll.u32 %s2, 4
      %s40 = int_to_ptr.hbm [resolvable:$true] %s39
      %s41 = sshll.u32 [#allocation8], 4
      %s42 = int_to_ptr.vmem [resolvable:$true] %s41
      %47 = dma.hbm_to_vmem [thread:$0]  %s40, 1024, %s42, [#allocation7], 64, 64, 4
    $region13: #{tpu_custom_call.1} parent=1 // pred_fallthru
      _
    // Predicated region
    $region14: #{tpu_custom_call.1} parent=1 // pred_check
      _
    $region15: #{tpu_custom_call.1} parent=1 // pred_check_branch
      %49 = sbr.rel (0) target = $region17
    $region16: #{tpu_custom_call.1} parent=1 // pred_region
      %51 = dma.done [#allocation4], 2048
    $region17: #{tpu_custom_call.1} parent=1 // pred_fallthru
      _
    // Predicated region
    $region18: #{tpu_custom_call.1} parent=1 // pred_check
      _
    $region19: #{tpu_custom_call.1} parent=1 // pred_check_branch
      %53 = sbr.rel (0) target = $region21
    $region20: #{tpu_custom_call.1} parent=1 // pred_region
      %55 = dma.done [#allocation7], 16
    $region21: #{tpu_custom_call.1} parent=1 // pred_fallthru
      _
    // Predicated region
    $region22: #{tpu_custom_call.1} parent=1 // pred_check
      _
    $region23: #{tpu_custom_call.1} parent=1 // pred_check_branch
      %57 = sbr.rel (0) target = $region25
    $region24: #{tpu_custom_call.1} parent=1 // pred_region
      %59 = dma.done [#allocation7], 1024
    $region25: #{tpu_custom_call.1} parent=1 // pred_fallthru
      _
    %p60 = scmp.eq.s32.totalorder 0, 0
    // Predicated region
    $region26: #{tpu_custom_call.1} parent=1 // pred_check
      %p61 = pneg %p60
    $region27: #{tpu_custom_call.1} parent=1 // pred_check_branch
      %63 = sbr.rel (%p61) target = $region29
    $region28: #{tpu_custom_call.1} parent=1 // pred_region
      %v64 = vld [vmem:[#allocation3] sm:$0xff]
      %v65 = vld [vmem:[#allocation3 + $0x8] sm:$0xff]
      %v66 = vld [vmem:[#allocation3 + $0x10] sm:$0xff]
      %v67 = vld [vmem:[#allocation3 + $0x18] sm:$0xff]
      %v68 = vld [vmem:[#allocation3 + $0x20] sm:$0xff]
      %v69 = vld [vmem:[#allocation3 + $0x28] sm:$0xff]
      %v70 = vld [vmem:[#allocation3 + $0x30] sm:$0xff]
      %v71 = vld [vmem:[#allocation3 + $0x38] sm:$0xff]
      %v72 = vld [vmem:[#allocation3 + $0x40] sm:$0xff]
      %v73 = vld [vmem:[#allocation3 + $0x48] sm:$0xff]
      %v74 = vld [vmem:[#allocation3 + $0x50] sm:$0xff]
      %v75 = vld [vmem:[#allocation3 + $0x58] sm:$0xff]
      %v76 = vld [vmem:[#allocation3 + $0x60] sm:$0xff]
      %v77 = vld [vmem:[#allocation3 + $0x68] sm:$0xff]
      %v78 = vld [vmem:[#allocation3 + $0x70] sm:$0xff]
      %v79 = vld [vmem:[#allocation3 + $0x78] sm:$0xff]
      %v80 = vtanh.pop %v64
      %v81 = vtanh.pop %v65
      %v82 = vtanh.pop %v66
      %v83 = vtanh.pop %v67
      %v84 = vtanh.pop %v68
      %v85 = vtanh.pop %v69
      %v86 = vtanh.pop %v70
      %v87 = vtanh.pop %v71
      %v88 = vtanh.pop %v72
      %v89 = vtanh.pop %v73
      %v90 = vtanh.pop %v74
      %v91 = vtanh.pop %v75
      %v92 = vtanh.pop %v76
      %v93 = vtanh.pop %v77
      %v94 = vtanh.pop %v78
      %v95 = vtanh.pop %v79
      %v96 = vand.u32 2147483647, %v80
      %v97 = vand.u32 2147483647, %v81
      %v98 = vand.u32 2147483647, %v82
      %v99 = vand.u32 2147483647, %v83
      %v100 = vand.u32 2147483647, %v84
      %v101 = vand.u32 2147483647, %v85
      %v102 = vand.u32 2147483647, %v86
      %v103 = vand.u32 2147483647, %v87
      %v104 = vand.u32 2147483647, %v88
      %v105 = vand.u32 2147483647, %v89
      %v106 = vand.u32 2147483647, %v90
      %v107 = vand.u32 2147483647, %v91
      %v108 = vand.u32 2147483647, %v92
      %v109 = vand.u32 2147483647, %v93
      %v110 = vand.u32 2147483647, %v94
      %v111 = vand.u32 2147483647, %v95
      %v112 = vmax.f32 %v96, %v100
      %v113 = vmax.f32 %v97, %v101
      %v114 = vmax.f32 %v98, %v102
      %v115 = vmax.f32 %v99, %v103
      %v116 = vmax.f32 %v112, %v104
      %v117 = vmax.f32 %v113, %v105
      %v118 = vmax.f32 %v114, %v106
      %v119 = vmax.f32 %v115, %v107
      %v120 = vmax.f32 %v116, %v108
      %v121 = vmax.f32 %v117, %v109
      %v122 = vmax.f32 %v118, %v110
      %v123 = vmax.f32 %v119, %v111
      %v124 = vmax.f32 %v120, %v121
      %v125 = vmax.f32 %v122, %v123
      %v126 = vmax.f32 %v124, %v125
      %127 = vmax.xlane.f32.xlu0 %v126
      %v128 = vpop.xlane.xlu0 %127
      %v129 = vrot.slane %v128, 4
      %v130 = vmax.f32 %v128, %v129
      %v131 = vrot.slane %v130, 2
      %v132 = vmax.f32 %v130, %v131
      %v133 = vrot.slane %v132, 1
      %v134 = vmax.f32 %v132, %v133
      %s135 = vtos %v134
      %s136 = smax.f32 %s135, 1e-08
      %s137 = smul.f32 %s136, 2.0
      %v138 = vstv %s137
      %v139 = vrcp.pop %v138
      %v140 = vmul.f32 %v138, %v139
      %v141 = vsub.f32 1.0, %v140
      %v142 = vmul.f32 %v139, %v141
      %v143 = vadd.f32 %v139, %v142
      %vm144 = vweird.f32 %v138
      %vm145 = vweird.f32 %v139
      %vm146 = vmor %vm144, %vm145
      %v147 = vsel %vm146, %v139, %v143
      %v148 = vand.u32 2147483647, %v138
      %vm149 = vcmp.eq.f32.partialorder %v148, 8.507059e+37
      %v150 = vand.u32 %v138, 2147483648
      %v151 = vor.u32 1.1754944e-38, %v150
      %v152 = vsel %vm149, %v151, %v147
      %v153 = vmul.f32 %v80, %v152
      %v154 = vmul.f32 %v81, %v152
      %v155 = vmul.f32 %v82, %v152
      %v156 = vmul.f32 %v83, %v152
      %v157 = vmul.f32 %v84, %v152
      %v158 = vmul.f32 %v85, %v152
      %v159 = vmul.f32 %v86, %v152
      %v160 = vmul.f32 %v87, %v152
      %v161 = vmul.f32 %v88, %v152
      %v162 = vmul.f32 %v89, %v152
      %v163 = vmul.f32 %v90, %v152
      %v164 = vmul.f32 %v91, %v152
      %v165 = vmul.f32 %v92, %v152
      %v166 = vmul.f32 %v93, %v152
      %v167 = vmul.f32 %v94, %v152
      %v168 = vmul.f32 %v95, %v152
      %v169 = vadd.f32 %v153, 0.5
      %v170 = vadd.f32 %v154, 0.5
      %v171 = vadd.f32 %v155, 0.5
      %v172 = vadd.f32 %v156, 0.5
      %v173 = vadd.f32 %v157, 0.5
      %v174 = vadd.f32 %v158, 0.5
      %v175 = vadd.f32 %v159, 0.5
      %v176 = vadd.f32 %v160, 0.5
      %v177 = vadd.f32 %v161, 0.5
      %v178 = vadd.f32 %v162, 0.5
      %v179 = vadd.f32 %v163, 0.5
      %v180 = vadd.f32 %v164, 0.5
      %v181 = vadd.f32 %v165, 0.5
      %v182 = vadd.f32 %v166, 0.5
      %v183 = vadd.f32 %v167, 0.5
      %v184 = vadd.f32 %v168, 0.5
      %v185 = vmul.f32 %v169, 255.0
      %v186 = vmul.f32 %v170, 255.0
      %v187 = vmul.f32 %v171, 255.0
      %v188 = vmul.f32 %v172, 255.0
      %v189 = vmul.f32 %v173, 255.0
      %v190 = vmul.f32 %v174, 255.0
      %v191 = vmul.f32 %v175, 255.0
      %v192 = vmul.f32 %v176, 255.0
      %v193 = vmul.f32 %v177, 255.0
      %v194 = vmul.f32 %v178, 255.0
      %v195 = vmul.f32 %v179, 255.0
      %v196 = vmul.f32 %v180, 255.0
      %v197 = vmul.f32 %v181, 255.0
      %v198 = vmul.f32 %v182, 255.0
      %v199 = vmul.f32 %v183, 255.0
      %v200 = vmul.f32 %v184, 255.0
      %v201 = vround.ne.pseudo %v185
      %v202 = vround.ne.pseudo %v186
      %v203 = vround.ne.pseudo %v187
      %v204 = vround.ne.pseudo %v188
      %v205 = vround.ne.pseudo %v189
      %v206 = vround.ne.pseudo %v190
      %v207 = vround.ne.pseudo %v191
      %v208 = vround.ne.pseudo %v192
      %v209 = vround.ne.pseudo %v193
      %v210 = vround.ne.pseudo %v194
      %v211 = vround.ne.pseudo %v195
      %v212 = vround.ne.pseudo %v196
      %v213 = vround.ne.pseudo %v197
      %v214 = vround.ne.pseudo %v198
      %v215 = vround.ne.pseudo %v199
      %v216 = vround.ne.pseudo %v200
      %v217 = vrcp.pop 255.0
      %v218 = vmul.f32 255.0, %v217
      %v219 = vsub.f32 1.0, %v218
      %v220 = vmul.f32 %v217, %v219
      %v221 = vadd.f32 %v217, %v220
      %vm222 = vweird.f32 %v217
      %v223 = vsel %vm222, %v217, %v221
      %v224 = vmul.f32 %v201, %v223
      %v225 = vmul.f32 %v202, %v223
      %v226 = vmul.f32 %v203, %v223
      %v227 = vmul.f32 %v204, %v223
      %v228 = vmul.f32 %v205, %v223
      %v229 = vmul.f32 %v206, %v223
      %v230 = vmul.f32 %v207, %v223
      %v231 = vmul.f32 %v208, %v223
      %v232 = vmul.f32 %v209, %v223
      %v233 = vmul.f32 %v210, %v223
      %v234 = vmul.f32 %v211, %v223
      %v235 = vmul.f32 %v212, %v223
      %v236 = vmul.f32 %v213, %v223
      %v237 = vmul.f32 %v214, %v223
      %v238 = vmul.f32 %v215, %v223
      %v239 = vmul.f32 %v216, %v223
      %v240 = vmul.f32 %v224, 2.0
      %v241 = vmul.f32 %v225, 2.0
      %v242 = vmul.f32 %v226, 2.0
      %v243 = vmul.f32 %v227, 2.0
      %v244 = vmul.f32 %v228, 2.0
      %v245 = vmul.f32 %v229, 2.0
      %v246 = vmul.f32 %v230, 2.0
      %v247 = vmul.f32 %v231, 2.0
      %v248 = vmul.f32 %v232, 2.0
      %v249 = vmul.f32 %v233, 2.0
      %v250 = vmul.f32 %v234, 2.0
      %v251 = vmul.f32 %v235, 2.0
      %v252 = vmul.f32 %v236, 2.0
      %v253 = vmul.f32 %v237, 2.0
      %v254 = vmul.f32 %v238, 2.0
      %v255 = vmul.f32 %v239, 2.0
      %v256 = vsub.f32 %v240, 1.0
      %v257 = vsub.f32 %v241, 1.0
      %v258 = vsub.f32 %v242, 1.0
      %v259 = vsub.f32 %v243, 1.0
      %v260 = vsub.f32 %v244, 1.0
      %v261 = vsub.f32 %v245, 1.0
      %v262 = vsub.f32 %v246, 1.0
      %v263 = vsub.f32 %v247, 1.0
      %v264 = vsub.f32 %v248, 1.0
      %v265 = vsub.f32 %v249, 1.0
      %v266 = vsub.f32 %v250, 1.0
      %v267 = vsub.f32 %v251, 1.0
      %v268 = vsub.f32 %v252, 1.0
      %v269 = vsub.f32 %v253, 1.0
      %v270 = vsub.f32 %v254, 1.0
      %v271 = vsub.f32 %v255, 1.0
      %272 = vxpose.xlu0.b32.start [1/16] %v256, 128
      %273 = vxpose.xlu0.b32.cont [2/16] %v257, 128
      %274 = vxpose.xlu0.b32.cont [3/16] %v258, 128
      %275 = vxpose.xlu0.b32.cont [4/16] %v259, 128
      %276 = vxpose.xlu0.b32.cont [5/16] %v260, 128
      %277 = vxpose.xlu0.b32.cont [6/16] %v261, 128
      %278 = vxpose.xlu0.b32.cont [7/16] %v262, 128
      %279 = vxpose.xlu0.b32.cont [8/16] %v263, 128
      %280 = vxpose.xlu0.b32.cont [9/16] %v264, 128
      %281 = vxpose.xlu0.b32.cont [10/16] %v265, 128
      %282 = vxpose.xlu0.b32.cont [11/16] %v266, 128
      %283 = vxpose.xlu0.b32.cont [12/16] %v267, 128
      %284 = vxpose.xlu0.b32.cont [13/16] %v268, 128
      %285 = vxpose.xlu0.b32.cont [14/16] %v269, 128
      %286 = vxpose.xlu0.b32.cont [15/16] %v270, 128
      %287 = vxpose.xlu0.b32.end [16/16] %v271, 128
      %v288 = vpop.trf.xlu0
      %v289 = vpop.trf.xlu0
      %v290 = vpop.trf.xlu0
      %v291 = vpop.trf.xlu0
      %v292 = vpop.trf.xlu0
      %v293 = vpop.trf.xlu0
      %v294 = vpop.trf.xlu0
      %v295 = vpop.trf.xlu0
      %v296 = vpop.trf.xlu0
      %v297 = vpop.trf.xlu0
      %v298 = vpop.trf.xlu0
      %v299 = vpop.trf.xlu0
      %v300 = vpop.trf.xlu0
      %v301 = vpop.trf.xlu0
      %v302 = vpop.trf.xlu0
      %v303 = vpop.trf.xlu0
      %v304 = vpack.c.bf16 %v288, %v288
      %v305 = vpack.c.bf16 %v289, %v289
      %v306 = vpack.c.bf16 %v290, %v290
      %v307 = vpack.c.bf16 %v291, %v291
      %v308 = vpack.c.bf16 %v292, %v292
      %v309 = vpack.c.bf16 %v293, %v293
      %v310 = vpack.c.bf16 %v294, %v294
      %v311 = vpack.c.bf16 %v295, %v295
      %v312 = vpack.c.bf16 %v296, %v296
      %v313 = vpack.c.bf16 %v297, %v297
      %v314 = vpack.c.bf16 %v298, %v298
      %v315 = vpack.c.bf16 %v299, %v299
      %v316 = vpack.c.bf16 %v300, %v300
      %v317 = vpack.c.bf16 %v301, %v301
      %v318 = vpack.c.bf16 %v302, %v302
      %v319 = vpack.c.bf16 %v303, %v303
      %320 = vst [vmem:[#allocation2] sm:$0xf] %v304
      %321 = vst [vmem:[#allocation2 + $0x4] sm:$0xf] %v305
      %322 = vst [vmem:[#allocation2 + $0x8] sm:$0xf] %v306
      %323 = vst [vmem:[#allocation2 + $0xc] sm:$0xf] %v307
      %324 = vst [vmem:[#allocation2 + $0x10] sm:$0xf] %v308
      %325 = vst [vmem:[#allocation2 + $0x14] sm:$0xf] %v309
      %326 = vst [vmem:[#allocation2 + $0x18] sm:$0xf] %v310
      %327 = vst [vmem:[#allocation2 + $0x1c] sm:$0xf] %v311
      %328 = vst [vmem:[#allocation2 + $0x20] sm:$0xf] %v312
      %329 = vst [vmem:[#allocation2 + $0x24] sm:$0xf] %v313
      %330 = vst [vmem:[#allocation2 + $0x28] sm:$0xf] %v314
      %331 = vst [vmem:[#allocation2 + $0x2c] sm:$0xf] %v315
      %332 = vst [vmem:[#allocation2 + $0x30] sm:$0xf] %v316
      %333 = vst [vmem:[#allocation2 + $0x34] sm:$0xf] %v317
      %334 = vst [vmem:[#allocation2 + $0x38] sm:$0xf] %v318
      %335 = vst [vmem:[#allocation2 + $0x3c] sm:$0xf] %v319
    $region29: #{tpu_custom_call.1} parent=1 // pred_fallthru
      _
    %v336 = vld [vmem:[#allocation8] sm:$0xf]
    %v337 = vld [vmem:[#allocation8 + $0x4] sm:$0xf]
    %v338 = vld [vmem:[#allocation8 + $0x8] sm:$0xf]
    %v339 = vld [vmem:[#allocation8 + $0xc] sm:$0xf]
    %v340 = vld [vmem:[#allocation8 + $0x10] sm:$0xf]
    %v341 = vld [vmem:[#allocation8 + $0x14] sm:$0xf]
    %v342 = vld [vmem:[#allocation8 + $0x18] sm:$0xf]
    %v343 = vld [vmem:[#allocation8 + $0x1c] sm:$0xf]
    %v344 = vld [vmem:[#allocation8 + $0x20] sm:$0xf]
    %v345 = vld [vmem:[#allocation8 + $0x24] sm:$0xf]
    %v346 = vld [vmem:[#allocation8 + $0x28] sm:$0xf]
    %v347 = vld [vmem:[#allocation8 + $0x2c] sm:$0xf]
    %v348 = vld [vmem:[#allocation8 + $0x30] sm:$0xf]
    %v349 = vld [vmem:[#allocation8 + $0x34] sm:$0xf]
    %v350 = vld [vmem:[#allocation8 + $0x38] sm:$0xf]
    %v351 = vld [vmem:[#allocation8 + $0x3c] sm:$0xf]
    %v352 = vld [vmem:[#allocation2] sm:$0xf]
    %v353 = vld [vmem:[#allocation2 + $0x4] sm:$0xf]
    %v354 = vld [vmem:[#allocation2 + $0x8] sm:$0xf]
    %v355 = vld [vmem:[#allocation2 + $0xc] sm:$0xf]
    %v356 = vld [vmem:[#allocation2 + $0x10] sm:$0xf]
    %v357 = vld [vmem:[#allocation2 + $0x14] sm:$0xf]
    %v358 = vld [vmem:[#allocation2 + $0x18] sm:$0xf]
    %v359 = vld [vmem:[#allocation2 + $0x1c] sm:$0xf]
    %v360 = vld [vmem:[#allocation2 + $0x20] sm:$0xf]
    %v361 = vld [vmem:[#allocation2 + $0x24] sm:$0xf]
    %v362 = vld [vmem:[#allocation2 + $0x28] sm:$0xf]
    %v363 = vld [vmem:[#allocation2 + $0x2c] sm:$0xf]
    %v364 = vld [vmem:[#allocation2 + $0x30] sm:$0xf]
    %v365 = vld [vmem:[#allocation2 + $0x34] sm:$0xf]
    %v366 = vld [vmem:[#allocation2 + $0x38] sm:$0xf]
    %v367 = vld [vmem:[#allocation2 + $0x3c] sm:$0xf]
    %v368 = vld [vmem:[#allocation6] sm:$0x1]
    %v370 = vperm.slane %v368, 0
    %v388 = vunpack.c.l.b16 %v336
    %v389 = vunpack.c.l.b16 %v337
    %v390 = vunpack.c.l.b16 %v338
    %v391 = vunpack.c.l.b16 %v339
    %v392 = vunpack.c.l.b16 %v340
    %v393 = vunpack.c.l.b16 %v341
    %v394 = vunpack.c.l.b16 %v342
    %v395 = vunpack.c.l.b16 %v343
    %v396 = vunpack.c.l.b16 %v344
    %v397 = vunpack.c.l.b16 %v345
    %v398 = vunpack.c.l.b16 %v346
    %v399 = vunpack.c.l.b16 %v347
    %v400 = vunpack.c.l.b16 %v348
    %v401 = vunpack.c.l.b16 %v349
    %v402 = vunpack.c.l.b16 %v350
    %v403 = vunpack.c.l.b16 %v351
    %v404 = vpack.c.b16 %v389, %v388
    %v405 = vpack.c.b16 %v391, %v390
    %v406 = vpack.c.b16 %v393, %v392
    %v407 = vpack.c.b16 %v395, %v394
    %v408 = vpack.c.b16 %v397, %v396
    %v409 = vpack.c.b16 %v399, %v398
    %v410 = vpack.c.b16 %v401, %v400
    %v411 = vpack.c.b16 %v403, %v402
    %v436 = vunpack.c.l.b16 %v352
    %v437 = vunpack.c.l.b16 %v353
    %v438 = vunpack.c.l.b16 %v354
    %v439 = vunpack.c.l.b16 %v355
    %v440 = vunpack.c.l.b16 %v356
    %v441 = vunpack.c.l.b16 %v357
    %v442 = vunpack.c.l.b16 %v358
    %v443 = vunpack.c.l.b16 %v359
    %v444 = vunpack.c.l.b16 %v360
    %v445 = vunpack.c.l.b16 %v361
    %v446 = vunpack.c.l.b16 %v362
    %v447 = vunpack.c.l.b16 %v363
    %v448 = vunpack.c.l.b16 %v364
    %v449 = vunpack.c.l.b16 %v365
    %v450 = vunpack.c.l.b16 %v366
    %v451 = vunpack.c.l.b16 %v367
    %v452 = vpack.c.b16 %v437, %v436
    %v453 = vpack.c.b16 %v439, %v438
    %v454 = vpack.c.b16 %v441, %v440
    %v455 = vpack.c.b16 %v443, %v442
    %v456 = vpack.c.b16 %v445, %v444
    %v457 = vpack.c.b16 %v447, %v446
    %v458 = vpack.c.b16 %v449, %v448
    %v459 = vpack.c.b16 %v451, %v450
    %468 = vmatpush.bf16.msra.mxu0 %v459
    %469 = vmatpush.bf16.msra.mxu0 %v458
    %470 = vmatpush.bf16.msra.mxu0 %v457
    %471 = vmatpush.bf16.msra.mxu0 %v456
    %472 = vmatpush.bf16.msra.mxu0 %v455
    %473 = vmatpush.bf16.msra.mxu0 %v454
    %474 = vmatpush.bf16.msra.mxu0 %v453
    %475 = vmatpush.bf16.msra.mxu0 %v452
    %476 = vmatmul.bf16.gmra.mxu0 %v404
    %v477 = vpop.f32.mrf.mxu0
    %v478 = vadd.f32 %v370, %v477
    %v479 = vpop.f32.mrf.mxu0
    %v480 = vadd.f32 %v370, %v479
    %481 = vmatmul.bf16.gmra.mxu0 %v405
    %v482 = vpop.f32.mrf.mxu0
    %v483 = vadd.f32 %v370, %v482
    %v484 = vpop.f32.mrf.mxu0
    %v485 = vadd.f32 %v370, %v484
    %486 = vmatmul.bf16.gmra.mxu0 %v406
    %v487 = vpop.f32.mrf.mxu0
    %v488 = vadd.f32 %v370, %v487
    %v489 = vpop.f32.mrf.mxu0
    %v490 = vadd.f32 %v370, %v489
    %491 = vmatmul.bf16.gmra.mxu0 %v407
    %v492 = vpop.f32.mrf.mxu0
    %v493 = vadd.f32 %v370, %v492
    %v494 = vpop.f32.mrf.mxu0
    %v495 = vadd.f32 %v370, %v494
    %496 = vmatmul.bf16.gmra.mxu0 %v408
    %v497 = vpop.f32.mrf.mxu0
    %v498 = vadd.f32 %v370, %v497
    %v499 = vpop.f32.mrf.mxu0
    %v500 = vadd.f32 %v370, %v499
    %501 = vmatmul.bf16.gmra.mxu0 %v409
    %v502 = vpop.f32.mrf.mxu0
    %v503 = vadd.f32 %v370, %v502
    %v504 = vpop.f32.mrf.mxu0
    %v505 = vadd.f32 %v370, %v504
    %506 = vmatmul.bf16.gmra.mxu0 %v410
    %v507 = vpop.f32.mrf.mxu0
    %v508 = vadd.f32 %v370, %v507
    %v509 = vpop.f32.mrf.mxu0
    %v510 = vadd.f32 %v370, %v509
    %511 = vmatmul.bf16.gmra.mxu0 %v411
    %v512 = vpop.f32.mrf.mxu0
    %v513 = vadd.f32 %v370, %v512
    %v514 = vpop.f32.mrf.mxu0
    %v515 = vadd.f32 %v370, %v514
    %516 = vdwg.mxu0
    %517 = vst [vmem:[#allocation9] sm:$0xff] %v478
    %518 = vst [vmem:[#allocation9 + $0x8] sm:$0xff] %v480
    %519 = vst [vmem:[#allocation9 + $0x10] sm:$0xff] %v483
    %520 = vst [vmem:[#allocation9 + $0x18] sm:$0xff] %v485
    %521 = vst [vmem:[#allocation9 + $0x20] sm:$0xff] %v488
    %522 = vst [vmem:[#allocation9 + $0x28] sm:$0xff] %v490
    %523 = vst [vmem:[#allocation9 + $0x30] sm:$0xff] %v493
    %524 = vst [vmem:[#allocation9 + $0x38] sm:$0xff] %v495
    %525 = vst [vmem:[#allocation9 + $0x40] sm:$0xff] %v498
    %526 = vst [vmem:[#allocation9 + $0x48] sm:$0xff] %v500
    %527 = vst [vmem:[#allocation9 + $0x50] sm:$0xff] %v503
    %528 = vst [vmem:[#allocation9 + $0x58] sm:$0xff] %v505
    %529 = vst [vmem:[#allocation9 + $0x60] sm:$0xff] %v508
    %530 = vst [vmem:[#allocation9 + $0x68] sm:$0xff] %v510
    %531 = vst [vmem:[#allocation9 + $0x70] sm:$0xff] %v513
    %532 = vst [vmem:[#allocation9 + $0x78] sm:$0xff] %v515
    // Predicated region
    $region30: #{tpu_custom_call.1} parent=1 // pred_check
      _
    $region31: #{tpu_custom_call.1} parent=1 // pred_check_branch
      %534 = sbr.rel (0) target = $region33
    $region32: #{tpu_custom_call.1} parent=1 // pred_region
      %536 = vsyncadd [#allocation5], 0
      %s537 = sshll.u32 [#allocation9], 4
      %s538 = int_to_ptr.vmem [resolvable:$true] %s537
      %s539 = sshll.u32 %s3, 4
      %s540 = int_to_ptr.hbm [resolvable:$true] %s539
      %545 = dma.vmem_to_hbm [thread:$0]  %s538, 2048, %s540, [#allocation5], 128, 128, 8
    $region33: #{tpu_custom_call.1} parent=1 // pred_fallthru
      _
    // Predicated region
    $region34: #{tpu_custom_call.1} parent=1 // pred_check
      _
    $region35: #{tpu_custom_call.1} parent=1 // pred_check_branch
      %547 = sbr.rel (0) target = $region37
    $region36: #{tpu_custom_call.1} parent=1 // pred_region
      %549 = dma.done [#allocation5], 2048
    $region37: #{tpu_custom_call.1} parent=1 // pred_fallthru
      _
    %550 = vsyncpa [#allocation4], 1
    %551 = vsyncpa [#allocation7], 1
    %552 = vsyncpa [#allocation5], 1

</llo_original>
